<compile_context>
chip_gen: v6e
topology: v6e:2x2x1
jax: 0.10.0
libtpu: 0.0.40
codegen_flags: <defaults>
</compile_context>

<pallas_src>
import jax
import jax.numpy as jnp
from jax.experimental import pallas as pl
from jax.experimental.pallas import tpu as pltpu


_LANES = 128
_MAX_OUTSTANDING_DMAS = 4
_MIN_CHUNK_BYTES = 4 * 1024 * 1024  # don't bother splitting below ~4 MiB / DMA


def _make_dma_copy_kernel(chunks):
    """Build a kernel doing chunked HBM->HBM async copies along axis 0.

    `chunks` is a static tuple of (start, size) row ranges covering the array.
    All DMAs are started before the first wait so they stay outstanding
    together.
    """

    def kernel(x_ref, o_ref, sems):
        copies = []
        for i, (start, size) in enumerate(chunks):
            cp = pltpu.make_async_copy(
                x_ref.at[pl.ds(start, size)],
                o_ref.at[pl.ds(start, size)],
                sems.at[i],
            )
            cp.start()
            copies.append(cp)
        for cp in copies:
            cp.wait()

    return kernel


def _hbm_copy(arr, chunks):
    """HBM->HBM copy of `arr` via chunked async DMAs (no VMEM staging)."""
    return pl.pallas_call(
        _make_dma_copy_kernel(chunks),
        out_shape=jax.ShapeDtypeStruct(arr.shape, arr.dtype),
        in_specs=[pl.BlockSpec(memory_space=pl.ANY)],
        out_specs=pl.BlockSpec(memory_space=pl.ANY),
        scratch_shapes=[pltpu.SemaphoreType.DMA((len(chunks),))],
    )(arr)


def _row_chunks(rows, row_bytes, align):
    """Split `rows` into <= _MAX_OUTSTANDING_DMAS contiguous chunks whose
    boundaries are multiples of `align` (the sublane granularity), so each DMA
    is tile-aligned in HBM."""
    total_bytes = rows * row_bytes
    n = int(min(_MAX_OUTSTANDING_DMAS, max(1, total_bytes // _MIN_CHUNK_BYTES)))
    chunk_rows = -(-rows // n)                    # ceil-div
    chunk_rows = -(-chunk_rows // align) * align  # round up to sublane multiple
    chunks = []
    start = 0
    while start < rows:
        size = min(chunk_rows, rows - start)
        chunks.append((start, size))
        start += size
    return tuple(chunks)


def _baseline_forward_impl(x):
    """Identity forward pass (Baseline.forward) as a Pallas TPU kernel."""
    orig_shape = x.shape
    n = x.size
    if n == 0:
        return x  # nothing to copy

    itemsize = jnp.dtype(x.dtype).itemsize

    if n % _LANES == 0:
        # Metadata-only reshape to a lane-dense (rows, 128) slab; chunk the row
        # axis on sublane-aligned boundaries for 1-4 outstanding DMAs.
        rows = n // _LANES
        sub = max(8, 32 // itemsize)  # 8 rows for f32, 16 for bf16, 32 for int8
        chunks = _row_chunks(rows, _LANES * itemsize, sub)
        x2d = x.reshape(rows, _LANES)
        return _hbm_copy(x2d, chunks).reshape(orig_shape)

    # Ragged element count: single whole-array HBM->HBM DMA.  No VMEM staging,
    # so there is no VMEM-size limit on this path (fixes the old fallback bug).
    # TODO(synk): chunk the leading axis here too for very large ragged arrays.
    x2d = x.reshape(1, n)  # metadata-only; also normalizes 0-d inputs
    return _hbm_copy(x2d, ((0, 1),)).reshape(orig_shape)


# jit so the (free) reshapes fuse with the pallas_call into one executable.
baseline_forward = jax.jit(_baseline_forward_impl)


if __name__ == "__main__":
    key = jax.random.PRNGKey(0)
    # Small NCHW input consistent with a generic vision-style module.
    x = jax.random.normal(key, (2, 4, 16, 16), dtype=jnp.float32)

    y = baseline_forward(x)
    y = jax.block_until_ready(y)

    assert y.shape == x.shape and y.dtype == x.dtype
    assert bool(jnp.all(y == x))
    print("KERNEL_OK")
</pallas_src>

<mosaic_0001>
module attributes {stable_mosaic.version = 11 : i64} {
  func.func @kernel(%arg0: memref<16x128xf32, #tpu.memory_space<any>>, %arg1: memref<16x128xf32, #tpu.memory_space<any>>, %arg2: memref<1x!tpu.dma_semaphore, #tpu.memory_space<semaphore_mem>>) attributes {dimension_semantics = [], scalar_prefetch = 0 : i64, scratch_operands = 1 : i64, tpu.core_type = #tpu.core_type<tc>} {
    %c0_i32 = arith.constant 0 : i32
    %c0_i32_0 = arith.constant 0 : i32
    %c0_i32_1 = arith.constant 0 : i32
    %0 = tpu.memref_slice %arg0[%c0_i32_0, %c0_i32_1] : memref<16x128xf32, #tpu.memory_space<any>> -> memref<16x128xf32, #tpu.memory_space<any>>
    %c0_i32_2 = arith.constant 0 : i32
    %c0_i32_3 = arith.constant 0 : i32
    %1 = tpu.memref_slice %arg1[%c0_i32_2, %c0_i32_3] : memref<16x128xf32, #tpu.memory_space<any>> -> memref<16x128xf32, #tpu.memory_space<any>>
    %2 = tpu.memref_slice %arg2[%c0_i32] : memref<1x!tpu.dma_semaphore, #tpu.memory_space<semaphore_mem>> -> memref<1x!tpu.dma_semaphore, #tpu.memory_space<semaphore_mem>>
    %3 = tpu.memref_squeeze %2 : memref<1x!tpu.dma_semaphore, #tpu.memory_space<semaphore_mem>> -> memref<!tpu.dma_semaphore, #tpu.memory_space<semaphore_mem>>
    tpu.enqueue_dma source(%0 : memref<16x128xf32, #tpu.memory_space<any>>) target(%1 : memref<16x128xf32, #tpu.memory_space<any>>) target_semaphore(%3 : memref<!tpu.dma_semaphore, #tpu.memory_space<semaphore_mem>>)
    %c0_i32_4 = arith.constant 0 : i32
    %c0_i32_5 = arith.constant 0 : i32
    %c0_i32_6 = arith.constant 0 : i32
    %4 = tpu.memref_slice %arg0[%c0_i32_5, %c0_i32_6] : memref<16x128xf32, #tpu.memory_space<any>> -> memref<16x128xf32, #tpu.memory_space<any>>
    %c0_i32_7 = arith.constant 0 : i32
    %c0_i32_8 = arith.constant 0 : i32
    %5 = tpu.memref_slice %arg1[%c0_i32_7, %c0_i32_8] : memref<16x128xf32, #tpu.memory_space<any>> -> memref<16x128xf32, #tpu.memory_space<any>>
    %6 = tpu.memref_slice %arg2[%c0_i32_4] : memref<1x!tpu.dma_semaphore, #tpu.memory_space<semaphore_mem>> -> memref<1x!tpu.dma_semaphore, #tpu.memory_space<semaphore_mem>>
    %7 = tpu.memref_squeeze %6 : memref<1x!tpu.dma_semaphore, #tpu.memory_space<semaphore_mem>> -> memref<!tpu.dma_semaphore, #tpu.memory_space<semaphore_mem>>
    tpu.wait_dma2 semaphore(%7 : memref<!tpu.dma_semaphore, #tpu.memory_space<semaphore_mem>>) src(%4 : memref<16x128xf32, #tpu.memory_space<any>>) dst(%5 : memref<16x128xf32, #tpu.memory_space<any>>)
    return
  }
}

</mosaic_0001>

<llo_original>
// kernel: _baseline_forward_impl.1
$region0: #{_baseline_forward_impl.1}
  #allocation0 [shape = 'u32[]', space=smem, size = 0x4, offset = 0x4, fixed_abs, tag = 'smem constant byte address 0x4 - core index']
  #allocation1 [shape = 'u32[144,128]{1,0:T(1,128)}', space=vmem, size = 0x12000, scoped, tag = 'internal scratch']
  #allocation2 [shape = 's32[1]{0}', space=sflag, size = 0x4, scoped, tag = 'scratch operand']
  #allocation3 [shape = 's32[]', space=sflag, size = 0x4, offset = 0, fixed_abs, tag = 'sflag constant byte address 0x0 - dummy sync flag']
  %s0 = inlined_call_operand.vmem [shape: f32[16,128], index: 0, kind: input, shape index: {}]
  %s1 = inlined_call_operand.vmem [shape: f32[16,128], index: 1, kind: output, shape index: {}]
  %s2 = sld [smem:[#allocation0]]
  $region36: #{_baseline_forward_impl.1} parent=0
    _
  %s4 = ssub.s32 1, %s2
  %s5 = scalar_select 0, %s4, %s2
  %p7 = scmp.lt.u32.totalorder 16, 8
  %p8 = pneg %p7
  // Predicated region
  $region2: #{_baseline_forward_impl.1} parent=0 // pred_check
    _
  $region3: #{_baseline_forward_impl.1} parent=0 // pred_check_branch
    %10 = sbr.rel (%p7) target = $region5
  $region4: #{_baseline_forward_impl.1} parent=0 // pred_region
    %s26 = sand.u32 16, 7
    %p27 = scmp.eq.s32.totalorder %s26, 0
    // Predicated region
    $region17: #{_baseline_forward_impl.1} parent=4 // pred_check
      %p28 = pneg %p27
    $region18: #{_baseline_forward_impl.1} parent=4 // pred_check_branch
      %30 = sbr.rel (%p28) target = $region20
    $region19: #{_baseline_forward_impl.1} parent=4 // pred_region
      loop: start=0, step=1, limit=1
      $region21: #{_baseline_forward_impl.1} parent=19 // loop_pre_header
        _
      $region22: #{_baseline_forward_impl.1} parent=19 // loop_header
        %s32 = sphi 0, %s36
        %p33 = scmp.ge.s32.totalorder %s32, 1
        %s37 = sphi %s0, %s0
        %s38 = sphi %s1, %s1
      $region23: #{_baseline_forward_impl.1} parent=19 // loop_header_branch
        %35 = sbr.rel (%p33) target = $region27
      $region24: #{_baseline_forward_impl.1} parent=19 // loop_body
        %v39 = vld [vmem:[%s37] sm:$0xff]
        %40 = vst [vmem:[%s38] sm:$0xff] %v39
        %v41 = vld [vmem:[%s37 + $0x8] sm:$0xff]
        %42 = vst [vmem:[%s38 + $0x8] sm:$0xff] %v41
      $region25: #{_baseline_forward_impl.1} parent=19 // loop_footer
        %s36 = sadd.s32 1, %s32
      $region26: #{_baseline_forward_impl.1} parent=19 // loop_footer_branch
        %31 = sbr.rel target = $region22
      $region27: #{_baseline_forward_impl.1} parent=19 // loop_exit
        _
    $region20: #{_baseline_forward_impl.1} parent=4 // pred_fallthru
      _
    %p43 = pneg %p27
    // Predicated region
    $region28: #{_baseline_forward_impl.1} parent=4 // pred_check
      _
    $region29: #{_baseline_forward_impl.1} parent=4 // pred_check_branch
      %45 = sbr.rel (%p27) target = $region31
    $region30: #{_baseline_forward_impl.1} parent=4 // pred_region
      %s46 = sand.u32 16, 7
    $region31: #{_baseline_forward_impl.1} parent=4 // pred_fallthru
      _
  $region5: #{_baseline_forward_impl.1} parent=0 // pred_fallthru
    _
  // Predicated region
  $region6: #{_baseline_forward_impl.1} parent=0 // pred_check
    %p11 = pneg %p7
  $region7: #{_baseline_forward_impl.1} parent=0 // pred_check_branch
    %13 = sbr.rel (%p11) target = $region9
  $region8: #{_baseline_forward_impl.1} parent=0 // pred_region
    %s14 = sshll.u32 1, 16
    %s15 = ssub.s32 %s14, 1
    loop: start=0, step=1, limit=1
    $region10: #{_baseline_forward_impl.1} parent=8 // loop_pre_header
      _
    $region11: #{_baseline_forward_impl.1} parent=8 // loop_header
      %s17 = sphi 0, %s21
      %p18 = scmp.ge.s32.totalorder %s17, 1
      %s22 = sphi %s0, %s0
      %s23 = sphi %s1, %s1
    $region12: #{_baseline_forward_impl.1} parent=8 // loop_header_branch
      %20 = sbr.rel (%p18) target = $region16
    $region13: #{_baseline_forward_impl.1} parent=8 // loop_body
      %v24 = vld [vmem:[%s22] sm:%s15]
      %25 = vst [vmem:[%s23] sm:%s15] %v24
    $region14: #{_baseline_forward_impl.1} parent=8 // loop_footer
      %s21 = sadd.s32 1, %s17
    $region15: #{_baseline_forward_impl.1} parent=8 // loop_footer_branch
      %16 = sbr.rel target = $region11
    $region16: #{_baseline_forward_impl.1} parent=8 // loop_exit
      _
  $region9: #{_baseline_forward_impl.1} parent=0 // pred_fallthru
    _
  // Predicated region
  $region32: #{_baseline_forward_impl.1} parent=0 // pred_check
    _
  $region33: #{_baseline_forward_impl.1} parent=0 // pred_check_branch
    %49 = sbr.rel (0) target = $region35
  $region34: #{_baseline_forward_impl.1} parent=0 // pred_region
    %50 = vsyncadd [#allocation2], 256
  $region35: #{_baseline_forward_impl.1} parent=0 // pred_fallthru
    _
  %s51 = smul.u32 16, 1
  %s52 = sshll.u32 %s51, 4
  %53 = dma.done [#allocation2], %s52
  %54 = vsyncmov [#allocation2]
  %s55 = vpop.sfrf %54
  %p56 = scmp.eq.s32.totalorder %s55, 0
  %p57 = pneg %p56
  %59 = shalt.err (%p57)

</llo_original>
